<compile_context>
chip_gen: v7x
topology: tpu7x:2x2x1
jax: 0.10.0
libtpu: 0.0.40
codegen_flags: <defaults>
</compile_context>

<pallas_src>
import math
from functools import partial

import jax
import jax.numpy as jnp
from jax import lax
from jax.experimental import pallas as pl
from jax.experimental.pallas import tpu as pltpu


# ---------------------------------------------------------------------------
# Kernel 1/3: fused linear  y = x @ W + b   (W stored as (in, out))
# ---------------------------------------------------------------------------
def _linear_kernel(x_ref, w_ref, b_ref, o_ref):
    acc = jnp.dot(x_ref[...], w_ref[...], preferred_element_type=jnp.float32)
    o_ref[...] = (acc + b_ref[...].astype(jnp.float32)).astype(o_ref.dtype)


def linear_pallas(x2d, w, b):
    """x2d: (M, K), w: (K, N), b: (N,) -> (M, N).

    Shapes here are tiny, so a single full-array VMEM block is used (last two
    block dims == full array dims satisfies the (8,128) rule).  For large M
    the row axis would be tiled instead.
    """
    M, K = x2d.shape
    K2, N = w.shape
    assert K == K2
    b2d = b.reshape(1, N)
    return pl.pallas_call(
        _linear_kernel,
        out_shape=jax.ShapeDtypeStruct((M, N), x2d.dtype),
        grid=(1,),
        in_specs=[
            pl.BlockSpec((M, K), lambda i: (0, 0)),
            pl.BlockSpec((K, N), lambda i: (0, 0)),
            pl.BlockSpec((1, N), lambda i: (0, 0)),
        ],
        out_specs=pl.BlockSpec((M, N), lambda i: (0, 0)),
        compiler_params=pltpu.CompilerParams(
            dimension_semantics=("arbitrary",)),
    )(x2d, w, b2d)


# ---------------------------------------------------------------------------
# Kernel 2: fused scaled-dot-product attention, one (batch, head) per grid step
# ---------------------------------------------------------------------------
def _attention_kernel(q_ref, k_ref, v_ref, attn_ref, o_ref, *, scale):
    q = q_ref[0].astype(jnp.float32)          # (N, Dh)
    k = k_ref[0].astype(jnp.float32)          # (N, Dh)
    v = v_ref[0]                              # (N, Dh)

    # s = q @ k^T  (contract on head dim), scaled
    s = lax.dot_general(q, k, (((1,), (1,)), ((), ())),
                        preferred_element_type=jnp.float32) * scale
    # numerically-stable softmax over the key axis
    s = s - jnp.max(s, axis=-1, keepdims=True)
    p = jnp.exp(s)
    attn = p / jnp.sum(p, axis=-1, keepdims=True)

    attn_ref[0] = attn.astype(attn_ref.dtype)
    ctx = jnp.dot(attn.astype(v.dtype), v, preferred_element_type=jnp.float32)
    o_ref[0] = ctx.astype(o_ref.dtype)


def attention_core_pallas(q, k, v, scale):
    """q, k, v: (B*H, N, Dh) -> (attn: (B*H, N, N), ctx: (B*H, N, Dh))"""
    BH, N, Dh = q.shape
    kernel = partial(_attention_kernel, scale=float(scale))
    return pl.pallas_call(
        kernel,
        out_shape=(jax.ShapeDtypeStruct((BH, N, N), q.dtype),
                   jax.ShapeDtypeStruct((BH, N, Dh), q.dtype)),
        grid=(BH,),
        in_specs=[pl.BlockSpec((1, N, Dh), lambda i: (i, 0, 0))] * 3,
        out_specs=(pl.BlockSpec((1, N, N), lambda i: (i, 0, 0)),
                   pl.BlockSpec((1, N, Dh), lambda i: (i, 0, 0))),
        compiler_params=pltpu.CompilerParams(
            dimension_semantics=("parallel",)),
    )(q, k, v)


# ---------------------------------------------------------------------------
# Module wrapper (JAX/Pallas counterpart of the PyTorch Attention module)
# ---------------------------------------------------------------------------
class Attention:
    def __init__(self, dim, num_heads=8, qkv_bias=False, qk_scale=None,
                 attn_drop=0.0, proj_drop=0.0, *, key, dtype=jnp.float32):
        self.num_heads = num_heads
        head_dim = dim // num_heads
        self.scale = qk_scale or head_dim ** (-0.5)

        k1, k2, k3, k4 = jax.random.split(key, 4)
        lim = 1.0 / math.sqrt(dim)
        # weights stored as (in, out) so kernels compute x @ W directly
        self.w_qkv = jax.random.uniform(k1, (dim, dim * 3), dtype, -lim, lim)
        self.b_qkv = (jax.random.uniform(k2, (dim * 3,), dtype, -lim, lim)
                      if qkv_bias else jnp.zeros((dim * 3,), dtype))
        self.w_proj = jax.random.uniform(k3, (dim, dim), dtype, -lim, lim)
        self.b_proj = jax.random.uniform(k4, (dim,), dtype, -lim, lim)

        # attn_drop / proj_drop are 0.0 in this config -> identity at runtime.
        # TODO(synk): pltpu.prng_* based dropout kernel for nonzero drop rates.
        self.attn_drop = attn_drop
        self.proj_drop = proj_drop
        self.attn_map = None

    def __call__(self, x):
        B, N, C = x.shape
        H = self.num_heads
        Dh = C // H

        # --- qkv projection (Pallas matmul) -------------------------------
        qkv = linear_pallas(x.reshape(B * N, C), self.w_qkv, self.b_qkv)
        qkv = qkv.reshape(B, N, 3, H, Dh).transpose(2, 0, 3, 1, 4)  # (3,B,H,N,Dh)
        q = qkv[0].reshape(B * H, N, Dh)
        k = qkv[1].reshape(B * H, N, Dh)
        v = qkv[2].reshape(B * H, N, Dh)

        # --- fused attention per (batch, head) (Pallas) --------------------
        attn, ctx = attention_core_pallas(q, k, v, self.scale)
        attn = attn.reshape(B, H, N, N)
        self.attn_map = attn

        # (B,H,N,Dh) -> (B,N,H,Dh) -> (B*N, C)
        ctx = ctx.reshape(B, H, N, Dh).transpose(0, 2, 1, 3).reshape(B * N, C)

        # --- output projection (Pallas matmul) -----------------------------
        out = linear_pallas(ctx, self.w_proj, self.b_proj).reshape(B, N, C)
        return out, attn


# ---------------------------------------------------------------------------
# Pure-JAX reference (mirrors the PyTorch forward math exactly)
# ---------------------------------------------------------------------------
def attention_reference(x, mod):
    B, N, C = x.shape
    H = mod.num_heads
    Dh = C // H
    with jax.default_matmul_precision("float32"):
        qkv = x.reshape(B * N, C) @ mod.w_qkv + mod.b_qkv
        qkv = qkv.reshape(B, N, 3, H, Dh).transpose(2, 0, 3, 1, 4)
        q, k, v = qkv[0], qkv[1], qkv[2]
        s = jnp.einsum("bhnd,bhmd->bhnm", q, k) * mod.scale
        attn = jax.nn.softmax(s, axis=-1)
        ctx = jnp.einsum("bhnm,bhmd->bhnd", attn, v)
        ctx = ctx.transpose(0, 2, 1, 3).reshape(B * N, C)
        out = ctx @ mod.w_proj + mod.b_proj
    return out.reshape(B, N, C), attn


if __name__ == "__main__":
    key = jax.random.PRNGKey(0)
    kx, kp = jax.random.split(key)

    # Small ViT-style token sequence: batch=2, seq=16, hidden=64, heads=8.
    B, N, C, H = 2, 16, 64, 8
    x = jax.random.normal(kx, (B, N, C), dtype=jnp.float32)

    module = Attention(dim=C, num_heads=H, qkv_bias=False, key=kp)

    out, attn = module(x)
    out = jax.block_until_ready(out)
    attn = jax.block_until_ready(attn)

    assert out.shape == (B, N, C) and out.dtype == x.dtype
    assert attn.shape == (B, H, N, N)
    assert bool(jnp.allclose(attn.sum(-1), 1.0, atol=1e-3)), \
        "softmax rows must sum to 1"

    ref_out, ref_attn = attention_reference(x, module)
    assert bool(jnp.allclose(attn, ref_attn, atol=2e-3, rtol=2e-3)), \
        "attention map mismatch vs reference"
    assert bool(jnp.allclose(out, ref_out, atol=2e-3, rtol=2e-3)), \
        "projection output mismatch vs reference"

    print("KERNEL_OK")
</pallas_src>

<mosaic_0001>
module attributes {stable_mosaic.version = 11 : i64} {
  func.func @_linear_kernel(%arg0: i32, %arg1: memref<32x64xf32, #tpu.memory_space<vmem>>, %arg2: memref<64x192xf32, #tpu.memory_space<vmem>>, %arg3: memref<1x192xf32, #tpu.memory_space<vmem>>, %arg4: memref<32x192xf32, #tpu.memory_space<vmem>>) attributes {dimension_semantics = [#tpu.dimension_semantics<arbitrary>], iteration_bounds = array<i64: 1>, scalar_prefetch = 0 : i64, scratch_operands = 0 : i64, tpu.core_type = #tpu.core_type<tc>, window_params = [{pipeline_mode = #tpu.pipeline_mode<synchronous>, transform_indices = @transform_0, window_bounds = array<i64: 32, 64>}, {pipeline_mode = #tpu.pipeline_mode<synchronous>, transform_indices = @transform_1, window_bounds = array<i64: 64, 192>}, {pipeline_mode = #tpu.pipeline_mode<synchronous>, transform_indices = @transform_2, window_bounds = array<i64: 1, 192>}, {pipeline_mode = #tpu.pipeline_mode<synchronous>, transform_indices = @transform_3, window_bounds = array<i64: 32, 192>}]} {
    %c0 = arith.constant 0 : index
    %c0_0 = arith.constant 0 : index
    %0 = vector.load %arg1[%c0, %c0_0] : memref<32x64xf32, #tpu.memory_space<vmem>>, vector<32x64xf32>
    %c0_1 = arith.constant 0 : index
    %c0_2 = arith.constant 0 : index
    %1 = vector.load %arg2[%c0_1, %c0_2] : memref<64x192xf32, #tpu.memory_space<vmem>>, vector<64x192xf32>
    %cst = arith.constant dense<0.000000e+00> : vector<32x192xf32>
    %2 = tpu.matmul %0, %1, %cst {dimension_numbers = #tpu.dot_dimension_numbers<[1], [0], [0], [1], [0, 0, 1, 1], [], []>} : vector<32x64xf32>, vector<64x192xf32>, vector<32x192xf32> -> vector<32x192xf32>
    %c0_3 = arith.constant 0 : index
    %c0_4 = arith.constant 0 : index
    %3 = vector.load %arg3[%c0_3, %c0_4] : memref<1x192xf32, #tpu.memory_space<vmem>>, vector<1x192xf32>
    %4 = vector.broadcast %3 : vector<1x192xf32> to vector<32x192xf32>
    %5 = arith.addf %2, %4 : vector<32x192xf32>
    %c0_5 = arith.constant 0 : index
    %c0_6 = arith.constant 0 : index
    %6 = vector.load %arg4[%c0_5, %c0_6] : memref<32x192xf32, #tpu.memory_space<vmem>>, vector<32x192xf32>
    tpu.vector_store %arg4[%c0_5, %c0_6], %5 {strides = array<i32>} : memref<32x192xf32, #tpu.memory_space<vmem>>, vector<32x192xf32>,
    return
  }
  func.func @transform_0(%arg0: i32) -> (i32, i32) {
    %c0_i32 = arith.constant 0 : i32
    %c0_i32_0 = arith.constant 0 : i32
    %c0_i32_1 = arith.constant 0 : i32
    return %c0_i32, %c0_i32_0 : i32, i32
  }
  func.func @transform_1(%arg0: i32) -> (i32, i32) {
    %c0_i32 = arith.constant 0 : i32
    %c0_i32_0 = arith.constant 0 : i32
    %c0_i32_1 = arith.constant 0 : i32
    return %c0_i32, %c0_i32_0 : i32, i32
  }
  func.func @transform_2(%arg0: i32) -> (i32, i32) {
    %c0_i32 = arith.constant 0 : i32
    %c0_i32_0 = arith.constant 0 : i32
    %c0_i32_1 = arith.constant 0 : i32
    return %c0_i32, %c0_i32_0 : i32, i32
  }
  func.func @transform_3(%arg0: i32) -> (i32, i32) {
    %c0_i32 = arith.constant 0 : i32
    %c0_i32_0 = arith.constant 0 : i32
    %c0_i32_1 = arith.constant 0 : i32
    return %c0_i32, %c0_i32_0 : i32, i32
  }
}

</mosaic_0001>

<llo_original>
// kernel: tpu_custom_call.1
$region0: #{tpu_custom_call.1}
  #allocation0 [shape = 'u32[]', space=smem, size = 0x4, offset = 0x4, fixed_abs, tag = 'smem constant byte address 0x4 - core index']
  #allocation1 [shape = 'u32[144,128]{1,0:T(1,128)}', space=vmem, size = 0x12000, scoped, tag = 'internal scratch']
  %s0 = inlined_call_operand.hbm [shape: f32[32,64], index: 0, kind: input, shape index: {}]
  %s1 = inlined_call_operand.hbm [shape: f32[64,192], index: 1, kind: input, shape index: {}]
  %s2 = inlined_call_operand.vmem [shape: f32[1,192], index: 2, kind: input, shape index: {}]
  %s3 = inlined_call_operand.hbm [shape: f32[32,192], index: 3, kind: output, shape index: {}]
  %s4 = sld [smem:[#allocation0]]
  $region30: #{tpu_custom_call.1} parent=0
    _
  %s6 = ssub.s32 1, %s4
  %s7 = scalar_select 0, %s6, %s4
  $region1: #{tpu_custom_call.1} parent=0
    #allocation2 [shape = 'u8[16384]{0}', space=vmem, size = 0x4000, scoped, tag = 'input window, operand 0, single buffered']
    #allocation3 [shape = 's32[1]{0}', space=sflag, size = 0x4, scoped, tag = 'scoped memory for tpu_custom_call.1']
    #allocation4 [shape = 's32[1]{0}', space=sflag, size = 0x4, scoped, tag = 'scoped memory for tpu_custom_call.1']
    #allocation5 [shape = 'u8[65536]{0}', space=vmem, size = 0x10000, scoped, tag = 'input window, operand 1, single buffered']
    #allocation6 [shape = 's32[1]{0}', space=sflag, size = 0x4, scoped, tag = 'scoped memory for tpu_custom_call.1']
    #allocation7 [shape = 'u8[32768]{0}', space=vmem, size = 0x8000, scoped, tag = 'output window, operand 0, single buffered']
    %8 = vsyncpa [#allocation3], 0
    %9 = vsyncpa [#allocation6], 0
    %10 = vsyncpa [#allocation4], 0
    // Predicated region
    $region2: #{tpu_custom_call.1} parent=1 // pred_check
      _
    $region3: #{tpu_custom_call.1} parent=1 // pred_check_branch
      %12 = sbr.rel (0) target = $region5
    $region4: #{tpu_custom_call.1} parent=1 // pred_region
      %s14 = ssub.s32 512, 512
      %15 = vsyncadd [#allocation3], %s14
      %s16 = sshll.u32 [#allocation2], 4
      %s17 = int_to_ptr.vmem [resolvable:$true] %s16
      %22 = dma.hbm_to_vmem [thread:$0]  %s0, 512, %s17, [#allocation3], 128, 128, 8
    $region5: #{tpu_custom_call.1} parent=1 // pred_fallthru
      _
    // Predicated region
    $region6: #{tpu_custom_call.1} parent=1 // pred_check
      _
    $region7: #{tpu_custom_call.1} parent=1 // pred_check_branch
      %24 = sbr.rel (0) target = $region9
    $region8: #{tpu_custom_call.1} parent=1 // pred_region
      %s26 = ssub.s32 2048, 2048
      %27 = vsyncadd [#allocation6], %s26
      %s28 = sshll.u32 [#allocation5], 4
      %s29 = int_to_ptr.vmem [resolvable:$true] %s28
      %34 = dma.hbm_to_vmem [thread:$0]  %s1, 2048, %s29, [#allocation6], 256, 256, 16
    $region9: #{tpu_custom_call.1} parent=1 // pred_fallthru
      _
    // Predicated region
    $region10: #{tpu_custom_call.1} parent=1 // pred_check
      _
    $region11: #{tpu_custom_call.1} parent=1 // pred_check_branch
      %36 = sbr.rel (0) target = $region13
    $region12: #{tpu_custom_call.1} parent=1 // pred_region
      _
    $region13: #{tpu_custom_call.1} parent=1 // pred_fallthru
      _
    // Predicated region
    $region14: #{tpu_custom_call.1} parent=1 // pred_check
      _
    $region15: #{tpu_custom_call.1} parent=1 // pred_check_branch
      %38 = sbr.rel (0) target = $region17
    $region16: #{tpu_custom_call.1} parent=1 // pred_region
      %39 = dma.done [#allocation3], 512
    $region17: #{tpu_custom_call.1} parent=1 // pred_fallthru
      _
    // Predicated region
    $region18: #{tpu_custom_call.1} parent=1 // pred_check
      _
    $region19: #{tpu_custom_call.1} parent=1 // pred_check_branch
      %41 = sbr.rel (0) target = $region21
    $region20: #{tpu_custom_call.1} parent=1 // pred_region
      %42 = dma.done [#allocation6], 2048
    $region21: #{tpu_custom_call.1} parent=1 // pred_fallthru
      _
    %v43 = vld [vmem:[#allocation2] sm:$0xff]
    %v44 = vld [vmem:[#allocation2 + $0x8] sm:$0xff]
    %v45 = vld [vmem:[#allocation2 + $0x10] sm:$0xff]
    %v46 = vld [vmem:[#allocation2 + $0x18] sm:$0xff]
    %v47 = vld [vmem:[#allocation5] sm:$0xff]
    %v48 = vld [vmem:[#allocation5 + $0x8] sm:$0xff]
    %v49 = vld [vmem:[#allocation5 + $0x10] sm:$0xff]
    %v50 = vld [vmem:[#allocation5 + $0x18] sm:$0xff]
    %v51 = vld [vmem:[#allocation5 + $0x20] sm:$0xff]
    %v52 = vld [vmem:[#allocation5 + $0x28] sm:$0xff]
    %v53 = vld [vmem:[#allocation5 + $0x30] sm:$0xff]
    %v54 = vld [vmem:[#allocation5 + $0x38] sm:$0xff]
    %v55 = vld [vmem:[#allocation5 + $0x40] sm:$0xff]
    %v56 = vld [vmem:[#allocation5 + $0x48] sm:$0xff]
    %v57 = vld [vmem:[#allocation5 + $0x50] sm:$0xff]
    %v58 = vld [vmem:[#allocation5 + $0x58] sm:$0xff]
    %v59 = vld [vmem:[#allocation5 + $0x60] sm:$0xff]
    %v60 = vld [vmem:[#allocation5 + $0x68] sm:$0xff]
    %v61 = vld [vmem:[#allocation5 + $0x70] sm:$0xff]
    %v62 = vld [vmem:[#allocation5 + $0x78] sm:$0xff]
    %v63 = vld [vmem:[%s2] sm:$0x3]
    %v65 = vlaneseq
    %v66 = vshrl.u32 %v65, 7
    %v67 = vsub.s32 0, %v66
    %v68 = vrot.slane %v63, %v67
    %v69 = vlaneseq
    %v70 = vshrl.u32 %v69, 7
    %v71 = vsub.s32 1, %v70
    %v72 = vrot.slane %v63, %v71
    %vm75 = vcmask 523264
    %v77 = vsel %vm75, %v43, 0
    %v80 = vsel %vm75, %v44, 0
    %v83 = vsel %vm75, %v45, 0
    %v86 = vsel %vm75, %v46, 0
    %88 = vmatprep.subr.mxu0 %v48
    %89 = vmatpush1.msra.mxu0 %v47
    %90 = vmatprep.subr.mxu0 %v50
    %91 = vmatpush1.msra.mxu0 %v49
    %92 = vmatprep.subr.mxu0 %v52
    %93 = vmatpush1.msra.mxu0 %v51
    %94 = vmatprep.subr.mxu0 %v54
    %95 = vmatpush1.msra.mxu0 %v53
    %96 = vmatprep.subr.mxu0 %v56
    %97 = vmatpush1.msra.mxu0 %v55
    %98 = vmatprep.subr.mxu0 %v58
    %99 = vmatpush1.msra.mxu0 %v57
    %100 = vmatprep.subr.mxu0 %v60
    %101 = vmatpush1.msra.mxu0 %v59
    %102 = vmatprep.subr.mxu0 %v62
    %103 = vmatpush1.msra.mxu0 %v61
    %104 = vmatprep.subr.mxu0 0.0
    %105 = vmatpush1.msra.mxu0 0.0
    %106 = vmatprep.subr.mxu0 0.0
    %107 = vmatpush1.msra.mxu0 0.0
    %108 = vmatprep.subr.mxu0 0.0
    %109 = vmatpush1.msra.mxu0 0.0
    %110 = vmatprep.subr.mxu0 0.0
    %111 = vmatpush1.msra.mxu0 0.0
    %112 = vmatprep.subr.mxu0 0.0
    %113 = vmatpush1.msra.mxu0 0.0
    %114 = vmatprep.subr.mxu0 0.0
    %115 = vmatpush1.msra.mxu0 0.0
    %116 = vmatprep.subr.mxu0 0.0
    %117 = vmatpush1.msra.mxu0 0.0
    %118 = vmatprep.subr.mxu0 0.0
    %119 = vmatpush1.msra.mxu0 0.0
    %120 = vmatprep.subr.mxu0 0.0
    %121 = vmatpush1.msra.mxu0 0.0
    %122 = vmatprep.subr.mxu0 0.0
    %123 = vmatpush1.msra.mxu0 0.0
    %124 = vmatprep.subr.mxu0 0.0
    %125 = vmatpush1.msra.mxu0 0.0
    %126 = vmatprep.subr.mxu0 0.0
    %127 = vmatpush1.msra.mxu0 0.0
    %128 = vmatprep.subr.mxu0 0.0
    %129 = vmatpush1.msra.mxu0 0.0
    %130 = vmatprep.subr.mxu0 0.0
    %131 = vmatpush1.msra.mxu0 0.0
    %132 = vmatprep.subr.mxu0 0.0
    %133 = vmatpush1.msra.mxu0 0.0
    %134 = vmatprep.subr.mxu0 0.0
    %135 = vmatpush1.msra.mxu0 0.0
    %136 = vmatprep.subr.mxu0 0.0
    %137 = vmatpush1.msra.mxu0 0.0
    %138 = vmatprep.subr.mxu0 0.0
    %139 = vmatpush1.msra.mxu0 0.0
    %140 = vmatprep.subr.mxu0 0.0
    %141 = vmatpush1.msra.mxu0 0.0
    %142 = vmatprep.subr.mxu0 0.0
    %143 = vmatpush1.msra.mxu0 0.0
    %144 = vmatprep.subr.mxu0 0.0
    %145 = vmatpush1.msra.mxu0 0.0
    %146 = vmatprep.subr.mxu0 0.0
    %147 = vmatpush1.msra.mxu0 0.0
    %148 = vmatprep.subr.mxu0 0.0
    %149 = vmatpush1.msra.mxu0 0.0
    %150 = vmatprep.subr.mxu0 0.0
    %151 = vmatpush1.msra.mxu0 0.0
    %152 = vmatprep.mubr.f32.mxu0 0.0
    %153 = vmatmul.mubr.f32.gmra.mrb[0].mxu0 %v77
    %v154 = vpop.f32.mrb[0].mxu0
    %v155 = vadd.f32 %v68, %v154
    %v156 = vpop.f32.mrb[0].mxu0
    %v157 = vadd.f32 %v72, %v156
    %158 = vmatprep.mubr.f32.mxu0 0.0
    %159 = vmatmul.mubr.f32.gmra.mrb[0].mxu0 %v80
    %v160 = vpop.f32.mrb[0].mxu0
    %v161 = vadd.f32 %v68, %v160
    %v162 = vpop.f32.mrb[0].mxu0
    %v163 = vadd.f32 %v72, %v162
    %164 = vmatprep.mubr.f32.mxu0 0.0
    %165 = vmatmul.mubr.f32.gmra.mrb[0].mxu0 %v83
    %v166 = vpop.f32.mrb[0].mxu0
    %v167 = vadd.f32 %v68, %v166
    %v168 = vpop.f32.mrb[0].mxu0
    %v169 = vadd.f32 %v72, %v168
    %170 = vmatprep.mubr.f32.mxu0 0.0
    %171 = vmatmul.mubr.f32.gmra.mrb[0].mxu0 %v86
    %v172 = vpop.f32.mrb[0].mxu0
    %v173 = vadd.f32 %v68, %v172
    %v174 = vpop.f32.mrb[0].mxu0
    %v175 = vadd.f32 %v72, %v174
    %176 = vdwg.mxu0
    %177 = vst [vmem:[#allocation7] sm:$0xff] %v155
    %178 = vst.msk [vmem:[#allocation7 + $0x8] sm:$0xff] %vm75, %v157
    %179 = vst [vmem:[#allocation7 + $0x10] sm:$0xff] %v161
    %180 = vst.msk [vmem:[#allocation7 + $0x18] sm:$0xff] %vm75, %v163
    %181 = vst [vmem:[#allocation7 + $0x20] sm:$0xff] %v167
    %182 = vst.msk [vmem:[#allocation7 + $0x28] sm:$0xff] %vm75, %v169
    %183 = vst [vmem:[#allocation7 + $0x30] sm:$0xff] %v173
    %184 = vst.msk [vmem:[#allocation7 + $0x38] sm:$0xff] %vm75, %v175
    // Predicated region
    $region22: #{tpu_custom_call.1} parent=1 // pred_check
      _
    $region23: #{tpu_custom_call.1} parent=1 // pred_check_branch
      %186 = sbr.rel (0) target = $region25
    $region24: #{tpu_custom_call.1} parent=1 // pred_region
      %s188 = ssub.s32 1024, 1024
      %189 = vsyncadd [#allocation4], %s188
      %s190 = sshll.u32 [#allocation7], 4
      %s191 = int_to_ptr.vmem [resolvable:$true] %s190
      %196 = dma.vmem_to_hbm [thread:$0]  %s191, 1024, %s3, [#allocation4], 256, 256, 16
    $region25: #{tpu_custom_call.1} parent=1 // pred_fallthru
      _
    // Predicated region
    $region26: #{tpu_custom_call.1} parent=1 // pred_check
      _
    $region27: #{tpu_custom_call.1} parent=1 // pred_check_branch
      %198 = sbr.rel (0) target = $region29
    $region28: #{tpu_custom_call.1} parent=1 // pred_region
      %199 = dma.done [#allocation4], 1024
    $region29: #{tpu_custom_call.1} parent=1 // pred_fallthru
      _
    %200 = vsyncpa [#allocation3], 1
    %201 = vsyncpa [#allocation6], 1
    %202 = vsyncpa [#allocation4], 1

</llo_original>
